<compile_context>
chip_gen: v6e
topology: v6e:2x2x1
jax: 0.10.0
libtpu: 0.0.40
codegen_flags: <defaults>
</compile_context>

<pallas_src>
import functools

import jax
import jax.numpy as jnp
from jax import lax
from jax.experimental import pallas as pl
from jax.experimental.pallas import tpu as pltpu


def _round_up(x, m):
    return ((x + m - 1) // m) * m


def _vmem_capacity_bytes():
    """Generation-aware VMEM capacity (v5e/v6e: 128 MiB, v7x: 64 MiB per TC)."""
    try:
        cap = int(pltpu.get_tpu_info().vmem_capacity_bytes)
        if cap > 0:
            return cap
    except Exception:
        pass
    return 64 * 1024 * 1024  # conservative fallback (v7x per-TC VMEM)


def _pick_tile(hw, c, score_dtype, tgt_dtype, max_lanes):
    """Lane-tile size from a sublane-padding-aware VMEM budget.

    Per grid step Pallas double-buffers one (C, tile) score block and one
    (1, tile) target block.  In VMEM the score block pads C up to 8/16/32
    sublanes (f32/bf16/i8) and the target block pads its single row up to a
    full packed sublane group (32 bytes per lane for both int32 and int8), so
    the budget must be computed on padded, not raw, sizes.
    """
    s_item = jnp.dtype(score_dtype).itemsize
    t_item = jnp.dtype(tgt_dtype).itemsize
    s_pad = _round_up(c, 32 // s_item)            # padded sublanes, score block
    t_pad = _round_up(1, 32 // t_item)            # padded sublanes, target block
    bytes_per_lane = s_pad * s_item + t_pad * t_item

    # Keep the double-buffered input working set well under the 32 MiB scoped
    # VMEM limit we request (and under ~1/3 of physical VMEM on any gen).
    input_budget = min(24 * 1024 * 1024, _vmem_capacity_bytes() // 3)

    lanes = input_budget // (2 * bytes_per_lane)  # x2: double buffering
    lanes = min(lanes, max_lanes)
    if hw <= lanes:
        return hw                 # one full-HW block (block == full dim is legal)
    return max(128, (lanes // 128) * 128)  # multiple of 128; ragged tail is masked


def _make_dice_sums_kernel(tile, hw_valid, j_per_split, apply_softmax, needs_mask):
    """Accumulate per-class (intersect, z_sum, y_sum) into a (C, 128) block.

    Grid point (n, s, j):
      score_ref : (C, tile)  raw scores, lane-columns [(s*J + j)*tile, ...)
      tgt_ref   : (1, tile)  integer labels for the same columns
      out_ref   : (C, 128)   resident accumulator for (sample n, split s);
                             lane 0 = intersect, lane 1 = z_sum, lane 2 = y_sum
    """
    # TODO(synk): if profiling shows EUP/VALU saturation on the softmax path
    # with small C, pack 8//C samples per block (row%C class iota) to fill the
    # sublanes; neutral when HBM/step-overhead bound, so not done here.

    def kernel(score_ref, tgt_ref, out_ref):
        j = pl.program_id(2)

        # Init the resident per-(sample, split) accumulator on the first tile.
        @pl.when(j == 0)
        def _():
            out_ref[...] = jnp.zeros_like(out_ref)

        x = score_ref[...].astype(jnp.float32)      # (C, tile), f32 accumulation
        t = tgt_ref[...].astype(jnp.int32)          # (1, tile)

        if apply_softmax:
            # softmax over the channel (sublane) axis == torch.softmax(dim=1).
            m = jnp.max(x, axis=0, keepdims=True)
            e = jnp.exp(x - m)
            # approx reciprocal -> EUP vrcp slot (free vs an exact VPU divide).
            x = e * pl.reciprocal(jnp.sum(e, axis=0, keepdims=True), approx=True)

        valid = None
        if needs_mask:
            # Ragged last tile: zero out columns >= HW with selects (applied
            # post-softmax so NaN/inf from undefined padded columns cannot leak
            # into valid ones -- select, not multiply).
            tile_idx = pl.program_id(1) * j_per_split + j
            col = tile_idx * tile + lax.broadcasted_iota(jnp.int32, x.shape, 1)
            valid = col < hw_valid
            x = jnp.where(valid, x, 0.0)

        # One-hot encode the target against the class index (sublane iota).
        # Labels outside [0, C) give an all-zero one-hot, matching the reference.
        cls = lax.broadcasted_iota(jnp.int32, x.shape, 0)
        hit = t == cls
        if needs_mask:
            hit = hit & valid
        onehot = hit.astype(jnp.float32)            # (C, tile)

        intersect = jnp.sum(x * onehot, axis=1, keepdims=True)   # (C, 1)
        z_sum = jnp.sum(x * x, axis=1, keepdims=True)            # (C, 1)
        y_sum = jnp.sum(onehot, axis=1, keepdims=True)           # onehot^2 == onehot

        # Pack the three (C, 1) sums into a lane-dense (C, 128) slab with a
        # broadcast+select -- no concat, no masked sub-vreg partial stores.
        lane = lax.broadcasted_iota(jnp.int32, out_ref.shape, 1)
        packed = jnp.where(lane == 0, intersect,
                 jnp.where(lane == 1, z_sum,
                 jnp.where(lane == 2, y_sum, 0.0)))
        out_ref[...] += packed

    return kernel


@functools.partial(jax.jit, static_argnames=("n_classes", "softmax", "max_lanes"))
def dice_loss(inputs, target, n_classes, weight=None, softmax=False,
              max_lanes=128 * 1024):
    """Pallas TPU implementation of DiceLoss.forward.

    inputs: (N, C, H, W) float scores (f32/bf16/f16; f32 accumulation in-kernel)
    target: (N, H, W) integer class labels (int8 labels quarter target traffic)
    """
    N, C, H, W = inputs.shape
    assert C == n_classes, "predict channels must equal n_classes"
    HW = H * W

    # Free reshapes only -- no HBM transpose, no pad, no materializing cast.
    score = inputs.reshape(N, C, HW)
    tgt = target.reshape(N, 1, HW)
    if (not jnp.issubdtype(tgt.dtype, jnp.integer)) or jnp.dtype(tgt.dtype).itemsize > 4:
        tgt = tgt.astype(jnp.int32)   # floats / int64 -> int32; int8/16/32 pass through

    tile = _pick_tile(HW, C, score.dtype, tgt.dtype, max_lanes)
    num_j = pl.cdiv(HW, tile)
    needs_mask = (HW % tile) != 0

    # Split the spatial tiles across a second "parallel" grid axis so both v7x
    # TensorCores stay busy even at N == 1 (harmless on 1-TC v5e/v6e).  Only
    # split when the tile count divides evenly so the grid covers HW exactly.
    n_splits = 2 if (num_j >= 2 and num_j % 2 == 0) else 1
    j_per_split = num_j // n_splits

    kernel = _make_dice_sums_kernel(tile, HW, j_per_split, softmax, needs_mask)

    out = pl.pallas_call(
        kernel,
        out_shape=jax.ShapeDtypeStruct((N, n_splits, C, 128), jnp.float32),
        grid_spec=pltpu.PrefetchScalarGridSpec(
            num_scalar_prefetch=0,
            grid=(N, n_splits, j_per_split),
            in_specs=[
                pl.BlockSpec((None, C, tile),
                             lambda n, s, j: (n, 0, s * j_per_split + j)),
                pl.BlockSpec((None, 1, tile),
                             lambda n, s, j: (n, 0, s * j_per_split + j)),
            ],
            out_specs=pl.BlockSpec((None, None, C, 128),
                                   lambda n, s, j: (n, s, 0, 0)),
        ),
        compiler_params=pltpu.CompilerParams(
            # (N, split) are independent -> megacore-parallel; the HW-tile axis
            # is the resident-accumulator revisit axis and stays innermost.
            dimension_semantics=("parallel", "parallel", "arbitrary"),
            # Above v5e's 16 MiB scoped default, within v7x's 64 MiB physical;
            # the padding-aware tile budget keeps inputs <= ~24 MiB.
            vmem_limit_bytes=32 * 1024 * 1024,
        ),
    )(score, tgt)

    # Tiny O(N * n_splits * C) reduction + scalar combination in plain JAX.
    sums = jnp.sum(out[..., :3], axis=(0, 1))             # (C, 3)
    intersect, z_sum, y_sum = sums[:, 0], sums[:, 1], sums[:, 2]

    smooth = 1e-05
    dice = 1.0 - (2.0 * intersect + smooth) / (z_sum + y_sum + smooth)   # (C,)

    if weight is None:
        w = jnp.ones((n_classes,), dtype=jnp.float32)
    else:
        w = jnp.asarray(weight, dtype=jnp.float32)
    return jnp.sum(dice * w) / n_classes


def _dice_loss_ref(inputs, target, n_classes, weight=None, softmax=False):
    """Pure-JAX reference matching the PyTorch module semantics."""
    inputs = inputs.astype(jnp.float32)
    if softmax:
        inputs = jax.nn.softmax(inputs, axis=1)
    onehot = jnp.stack(
        [(target == i).astype(jnp.float32) for i in range(n_classes)], axis=1
    )
    if weight is None:
        weight = [1.0] * n_classes
    smooth = 1e-05
    loss = 0.0
    for i in range(n_classes):
        s = inputs[:, i]
        t = onehot[:, i]
        intersect = jnp.sum(s * t)
        y_sum = jnp.sum(t * t)
        z_sum = jnp.sum(s * s)
        d = 1.0 - (2.0 * intersect + smooth) / (z_sum + y_sum + smooth)
        loss = loss + d * weight[i]
    return loss / n_classes


if __name__ == "__main__":
    key = jax.random.PRNGKey(0)
    k1, k2, k3, k4 = jax.random.split(key, 4)

    # Case 1: f32 scores, int32 labels, single full-HW tile; plain and softmax.
    N, C, H, W = 2, 4, 16, 16
    inputs = jax.random.normal(k1, (N, C, H, W), dtype=jnp.float32)
    target = jax.random.randint(k2, (N, H, W), 0, C, dtype=jnp.int32)

    out_plain = dice_loss(inputs, target, n_classes=C, softmax=False)
    out_soft = dice_loss(inputs, target, n_classes=C, softmax=True)
    jax.block_until_ready(out_plain)
    jax.block_until_ready(out_soft)

    ref_plain = _dice_loss_ref(inputs, target, C, softmax=False)
    ref_soft = _dice_loss_ref(inputs, target, C, softmax=True)
    assert jnp.allclose(out_plain, ref_plain, rtol=1e-5, atol=1e-5), (
        out_plain, ref_plain)
    # approx reciprocal in the softmax path -> ~1e-4-level perturbation.
    assert jnp.allclose(out_soft, ref_soft, rtol=2e-3, atol=2e-3), (
        out_soft, ref_soft)

    # Case 2: bf16 scores, int8 labels, ragged HW, forced multi-tile (small
    # max_lanes) -> exercises the masked last tile and the parallel spatial
    # split (grid = (1, 2, 2)).
    N2, C2, H2, W2 = 1, 3, 40, 40
    inputs2 = jax.random.normal(k3, (N2, C2, H2, W2), dtype=jnp.bfloat16)
    target2 = jax.random.randint(k4, (N2, H2, W2), 0, C2,
                                 dtype=jnp.int32).astype(jnp.int8)

    out2 = dice_loss(inputs2, target2, n_classes=C2, softmax=False, max_lanes=512)
    jax.block_until_ready(out2)
    ref2 = _dice_loss_ref(inputs2, target2, C2, softmax=False)
    assert jnp.allclose(out2, ref2, rtol=1e-4, atol=1e-4), (out2, ref2)

    print("KERNEL_OK")
</pallas_src>

<mosaic_0001>
module attributes {stable_mosaic.version = 11 : i64} {
  func.func @kernel(%arg0: i32, %arg1: i32, %arg2: i32, %arg3: memref<1x4x256xf32, #tpu.memory_space<vmem>>, %arg4: memref<1x1x256xi32, #tpu.memory_space<vmem>>, %arg5: memref<1x1x4x128xf32, #tpu.memory_space<vmem>>) attributes {dimension_semantics = [#tpu.dimension_semantics<parallel>, #tpu.dimension_semantics<parallel>, #tpu.dimension_semantics<arbitrary>], iteration_bounds = array<i64: 2, 1, 1>, scalar_prefetch = 0 : i64, scratch_operands = 0 : i64, tpu.core_type = #tpu.core_type<tc>, window_params = [{transform_indices = @transform_0, window_bounds = array<i64: 1, 4, 256>}, {transform_indices = @transform_1, window_bounds = array<i64: 1, 1, 256>}, {transform_indices = @transform_2, window_bounds = array<i64: 1, 1, 4, 128>}]} {
    %c0_i32 = arith.constant 0 : i32
    %0 = arith.cmpi eq, %arg2, %c0_i32 : i32
    %1 = arith.extui %0 : i1 to i32
    %c0_i32_0 = arith.constant 0 : i32
    %2 = arith.cmpi ne, %1, %c0_i32_0 : i32
    scf.if %2 {
      %cst_18 = arith.constant 0.000000e+00 : f32
      %43 = vector.broadcast %cst_18 : f32 to vector<4x128xf32>
      %c0_19 = arith.constant 0 : index
      %c0_20 = arith.constant 0 : index
      %c0_21 = arith.constant 0 : index
      %c0_22 = arith.constant 0 : index
      %44 = vector.load %arg5[%c0_19, %c0_20, %c0_21, %c0_22] : memref<1x1x4x128xf32, #tpu.memory_space<vmem>>, vector<1x1x4x128xf32>
      %45 = vector.shape_cast %44 : vector<1x1x4x128xf32> to vector<4x128xf32>
      %46 = vector.shape_cast %43 : vector<4x128xf32> to vector<1x1x4x128xf32>
      tpu.vector_store %arg5[%c0_19, %c0_20, %c0_21, %c0_22], %46 {strides = array<i32>} : memref<1x1x4x128xf32, #tpu.memory_space<vmem>>, vector<1x1x4x128xf32>,
    } else {
    }
    %c0 = arith.constant 0 : index
    %c0_1 = arith.constant 0 : index
    %c0_2 = arith.constant 0 : index
    %3 = vector.load %arg3[%c0, %c0_1, %c0_2] : memref<1x4x256xf32, #tpu.memory_space<vmem>>, vector<1x4x256xf32>
    %4 = vector.shape_cast %3 : vector<1x4x256xf32> to vector<4x256xf32>
    %c0_3 = arith.constant 0 : index
    %c0_4 = arith.constant 0 : index
    %c0_5 = arith.constant 0 : index
    %5 = vector.load %arg4[%c0_3, %c0_4, %c0_5] : memref<1x1x256xi32, #tpu.memory_space<vmem>>, vector<1x1x256xi32>
    %6 = vector.shape_cast %5 : vector<1x1x256xi32> to vector<1x256xi32>
    %7 = tpu.iota {dimensions = array<i32: 0>} : vector<4x256xi32>
    %8 = vector.broadcast %6 : vector<1x256xi32> to vector<4x256xi32>
    %9 = arith.cmpi eq, %8, %7 : vector<4x256xi32>
    %10 = arith.extui %9 : vector<4x256xi1> to vector<4x256xi32>
    %11 = arith.sitofp %10 : vector<4x256xi32> to vector<4x256xf32>
    %12 = arith.mulf %4, %11 : vector<4x256xf32>
    %cst = arith.constant dense<0.000000e+00> : vector<4xf32>
    %13 = vector.multi_reduction <add>, %12, %cst [1] : vector<4x256xf32> to vector<4xf32>
    %14 = vector.shape_cast %13 : vector<4xf32> to vector<4x1xf32>
    %15 = arith.mulf %4, %4 : vector<4x256xf32>
    %cst_6 = arith.constant dense<0.000000e+00> : vector<4xf32>
    %16 = vector.multi_reduction <add>, %15, %cst_6 [1] : vector<4x256xf32> to vector<4xf32>
    %17 = vector.shape_cast %16 : vector<4xf32> to vector<4x1xf32>
    %cst_7 = arith.constant dense<0.000000e+00> : vector<4xf32>
    %18 = vector.multi_reduction <add>, %11, %cst_7 [1] : vector<4x256xf32> to vector<4xf32>
    %19 = vector.shape_cast %18 : vector<4xf32> to vector<4x1xf32>
    %20 = tpu.iota {dimensions = array<i32: 1>} : vector<4x128xi32>
    %c0_i32_8 = arith.constant 0 : i32
    %21 = vector.broadcast %c0_i32_8 : i32 to vector<4x128xi32>
    %22 = arith.cmpi eq, %20, %21 : vector<4x128xi32>
    %c1_i32 = arith.constant 1 : i32
    %23 = vector.broadcast %c1_i32 : i32 to vector<4x128xi32>
    %24 = arith.cmpi eq, %20, %23 : vector<4x128xi32>
    %c2_i32 = arith.constant 2 : i32
    %25 = vector.broadcast %c2_i32 : i32 to vector<4x128xi32>
    %26 = arith.cmpi eq, %20, %25 : vector<4x128xi32>
    %cst_9 = arith.constant 0.000000e+00 : f32
    %27 = vector.shape_cast %19 : vector<4x1xf32> to vector<4x1xf32>
    %28 = vector.broadcast %27 : vector<4x1xf32> to vector<4x128xf32>
    %29 = vector.broadcast %cst_9 : f32 to vector<4x128xf32>
    %30 = arith.select %26, %28, %29 : vector<4x128xi1>, vector<4x128xf32>
    %31 = vector.shape_cast %17 : vector<4x1xf32> to vector<4x1xf32>
    %32 = vector.broadcast %31 : vector<4x1xf32> to vector<4x128xf32>
    %33 = arith.select %24, %32, %30 : vector<4x128xi1>, vector<4x128xf32>
    %34 = vector.shape_cast %14 : vector<4x1xf32> to vector<4x1xf32>
    %35 = vector.broadcast %34 : vector<4x1xf32> to vector<4x128xf32>
    %36 = arith.select %22, %35, %33 : vector<4x128xi1>, vector<4x128xf32>
    %c0_10 = arith.constant 0 : index
    %c0_11 = arith.constant 0 : index
    %c0_12 = arith.constant 0 : index
    %c0_13 = arith.constant 0 : index
    %37 = vector.load %arg5[%c0_10, %c0_11, %c0_12, %c0_13] : memref<1x1x4x128xf32, #tpu.memory_space<vmem>>, vector<1x1x4x128xf32>
    %38 = vector.shape_cast %37 : vector<1x1x4x128xf32> to vector<4x128xf32>
    %39 = arith.addf %38, %36 : vector<4x128xf32>
    %c0_14 = arith.constant 0 : index
    %c0_15 = arith.constant 0 : index
    %c0_16 = arith.constant 0 : index
    %c0_17 = arith.constant 0 : index
    %40 = vector.load %arg5[%c0_14, %c0_15, %c0_16, %c0_17] : memref<1x1x4x128xf32, #tpu.memory_space<vmem>>, vector<1x1x4x128xf32>
    %41 = vector.shape_cast %40 : vector<1x1x4x128xf32> to vector<4x128xf32>
    %42 = vector.shape_cast %39 : vector<4x128xf32> to vector<1x1x4x128xf32>
    tpu.vector_store %arg5[%c0_14, %c0_15, %c0_16, %c0_17], %42 {strides = array<i32>} : memref<1x1x4x128xf32, #tpu.memory_space<vmem>>, vector<1x1x4x128xf32>,
    return
  }
  func.func @transform_0(%arg0: i32, %arg1: i32, %arg2: i32) -> (i32, i32, i32) {
    %c1_i32 = arith.constant 1 : i32
    %0 = arith.muli %arg1, %c1_i32 : i32
    %1 = arith.addi %0, %arg2 : i32
    %c0_i32 = arith.constant 0 : i32
    %c0_i32_0 = arith.constant 0 : i32
    return %arg0, %c0_i32, %1 : i32, i32, i32
  }
  func.func @transform_1(%arg0: i32, %arg1: i32, %arg2: i32) -> (i32, i32, i32) {
    %c1_i32 = arith.constant 1 : i32
    %0 = arith.muli %arg1, %c1_i32 : i32
    %1 = arith.addi %0, %arg2 : i32
    %c0_i32 = arith.constant 0 : i32
    %c0_i32_0 = arith.constant 0 : i32
    return %arg0, %c0_i32, %1 : i32, i32, i32
  }
  func.func @transform_2(%arg0: i32, %arg1: i32, %arg2: i32) -> (i32, i32, i32, i32) {
    %c0_i32 = arith.constant 0 : i32
    %c0_i32_0 = arith.constant 0 : i32
    %c0_i32_1 = arith.constant 0 : i32
    return %arg0, %arg1, %c0_i32, %c0_i32_0 : i32, i32, i32, i32
  }
}

</mosaic_0001>

<llo_original>
// kernel: dice_loss.1
$region0: #{dice_loss.1}
  #allocation0 [shape = 'u32[]', space=smem, size = 0x4, offset = 0x4, fixed_abs, tag = 'smem constant byte address 0x4 - core index']
  #allocation1 [shape = 'u32[144,128]{1,0:T(1,128)}', space=vmem, size = 0x12000, scoped, tag = 'internal scratch']
  %s0 = inlined_call_operand.vmem [shape: f32[2,4,256], index: 0, kind: input, shape index: {}]
  %s1 = inlined_call_operand.vmem [shape: s32[2,1,256], index: 1, kind: input, shape index: {}]
  %s2 = inlined_call_operand.vmem [shape: f32[2,1,4,128], index: 2, kind: output, shape index: {}]
  %s3 = sld [smem:[#allocation0]]
  $region45: #{dice_loss.1} parent=0
    _
  %s5 = ssub.s32 1, %s3
  %s6 = scalar_select 0, %s5, %s3
  loop: start=0, step=1, limit=4
  $region2: #{dice_loss.1} parent=0 // loop_pre_header
    _
  $region3: #{dice_loss.1} parent=0 // loop_header
    %s8 = sphi 0, %s12
    %p9 = scmp.ge.s32.totalorder %s8, 4
    %s15 = sphi 0, %s34
    %s16 = sphi 0, %s30
    %s17 = sphi 0, %s26
    %s18 = sphi 0, %s15
    %s19 = sphi 0, %s16
    %s20 = sphi 0, %s17
    %s21 = sphi 0, %s18
    %s22 = sphi 0, %s19
    %s23 = sphi 0, %s20
    %s41 = sphi 0, %s43
    %s44 = sphi 0, %s41
    %s45 = sphi 0, %s44
    %s61 = sphi 0, %s45
    %s71 = sphi 0, %s73
    %s74 = sphi 0, %s71
    %s75 = sphi 0, %s74
    %s91 = sphi 0, %s75
    %s99 = sphi 0, %s101
    %s102 = sphi 0, %s99
    %s103 = sphi 0, %s102
    %s119 = sphi 0, %s103
  $region4: #{dice_loss.1} parent=0 // loop_header_branch
    %11 = sbr.rel (%p9) target = $region8
  $region5: #{dice_loss.1} parent=0 // loop_body
    %s13 = ssub.s32 %s8, 1
    %s14 = ssub.s32 %s8, 2
    %s24 = sadd.s32 1, %s17
    %p25 = scmp.ge.s32.totalorder %s24, 1
    %s26 = scalar_select %p25, 0, %s24
    %s27 = sadd.s32 1, %s16
    %s28 = scalar_select %p25, %s27, %s16
    %p29 = scmp.ge.s32.totalorder %s28, 1
    %s30 = scalar_select %p29, 0, %s28
    %s31 = sadd.s32 1, %s15
    %s32 = scalar_select %p29, %s31, %s15
    %p33 = scmp.ge.s32.totalorder %s32, 2
    %s34 = scalar_select %p33, 0, %s32
    %s35 = sadd.s32 %s16, %s17
    %s36 = sadd.s32 %s30, %s26
    %s37 = ssub.s32 %s15, %s34
    %s38 = ssub.s32 %s35, %s36
    %s39 = sor.u32 %s37, %s38
    %p40 = scmp.eq.s32.totalorder %s39, 0
    %s42 = sadd.s32 %s41, 1
    %s43 = scalar_select %p40, %s41, %s42
    %p46 = pneg %p40
    %p47 = scmp.eq.s32.totalorder %s8, 1
    %p48 = por %p46, %p47
    %p49 = scmp.ne.s32.totalorder %s41, %s44
    %p50 = scmp.eq.s32.totalorder %s8, 0
    %p51 = por %p49, %p50
    %p52 = scmp.ne.s32.totalorder %s41, %s44
    %p53 = scmp.eq.s32.totalorder %s13, 1
    %p54 = por %p52, %p53
    %p55 = scmp.ne.s32.totalorder %s44, %s45
    %p56 = scmp.eq.s32.totalorder %s13, 0
    %p57 = por %p55, %p56
    %p58 = scmp.ne.s32.totalorder %s44, %s45
    %p59 = scmp.eq.s32.totalorder %s14, 1
    %p60 = por %p58, %p59
    %p62 = scmp.ne.s32.totalorder %s45, %s61
    %p63 = scmp.eq.s32.totalorder %s14, 0
    %p64 = por %p62, %p63
    %s65 = sadd.s32 %s16, %s17
    %s66 = sadd.s32 %s30, %s26
    %s67 = ssub.s32 %s15, %s34
    %s68 = ssub.s32 %s65, %s66
    %s69 = sor.u32 %s67, %s68
    %p70 = scmp.eq.s32.totalorder %s69, 0
    %s72 = sadd.s32 %s71, 1
    %s73 = scalar_select %p70, %s71, %s72
    %p76 = pneg %p70
    %p77 = scmp.eq.s32.totalorder %s8, 1
    %p78 = por %p76, %p77
    %p79 = scmp.ne.s32.totalorder %s71, %s74
    %p80 = scmp.eq.s32.totalorder %s8, 0
    %p81 = por %p79, %p80
    %p82 = scmp.ne.s32.totalorder %s71, %s74
    %p83 = scmp.eq.s32.totalorder %s13, 1
    %p84 = por %p82, %p83
    %p85 = scmp.ne.s32.totalorder %s74, %s75
    %p86 = scmp.eq.s32.totalorder %s13, 0
    %p87 = por %p85, %p86
    %p88 = scmp.ne.s32.totalorder %s74, %s75
    %p89 = scmp.eq.s32.totalorder %s14, 1
    %p90 = por %p88, %p89
    %p92 = scmp.ne.s32.totalorder %s75, %s91
    %p93 = scmp.eq.s32.totalorder %s14, 0
    %p94 = por %p92, %p93
    %s95 = ssub.s32 %s15, %s34
    %s96 = ssub.s32 %s16, %s30
    %s97 = sor.u32 %s95, %s96
    %p98 = scmp.eq.s32.totalorder %s97, 0
    %s100 = sadd.s32 %s99, 1
    %s101 = scalar_select %p98, %s99, %s100
    %p104 = pneg %p98
    %p105 = scmp.eq.s32.totalorder %s8, 1
    %p106 = por %p104, %p105
    %p107 = scmp.ne.s32.totalorder %s99, %s102
    %p108 = scmp.eq.s32.totalorder %s8, 0
    %p109 = por %p107, %p108
    %p110 = scmp.ne.s32.totalorder %s99, %s102
    %p111 = scmp.eq.s32.totalorder %s13, 1
    %p112 = por %p110, %p111
    %p113 = scmp.ne.s32.totalorder %s102, %s103
    %p114 = scmp.eq.s32.totalorder %s13, 0
    %p115 = por %p113, %p114
    %p116 = scmp.ne.s32.totalorder %s102, %s103
    %p117 = scmp.eq.s32.totalorder %s14, 1
    %p118 = por %p116, %p117
    %p120 = scmp.ne.s32.totalorder %s103, %s119
    %p121 = scmp.eq.s32.totalorder %s14, 0
    %p122 = por %p120, %p121
    %p123 = scmp.le.s32.totalorder 1, %s8
    %p124 = scmp.lt.s32.totalorder %s8, 3
    %p125 = pnand %p123, %p124
    %p126 = pneg %p125
    // Predicated region
    $region9: #{dice_loss.1} parent=5 // pred_check
      _
    $region10: #{dice_loss.1} parent=5 // pred_check_branch
      %128 = sbr.rel (%p125) target = $region12
    $region11: #{dice_loss.1} parent=5 // pred_region
      %s129 = ssub.s32 %s8, 1
    $region12: #{dice_loss.1} parent=5 // pred_fallthru
      _
    %p130 = scmp.lt.s32.totalorder %s8, 2
    // Predicated region
    $region13: #{dice_loss.1} parent=5 // pred_check
      %p131 = pneg %p130
    $region14: #{dice_loss.1} parent=5 // pred_check_branch
      %133 = sbr.rel (%p131) target = $region16
    $region15: #{dice_loss.1} parent=5 // pred_region
      // Predicated region
      $region17: #{dice_loss.1} parent=15 // pred_check
        %p134 = pneg %p51
      $region18: #{dice_loss.1} parent=15 // pred_check_branch
        %136 = sbr.rel (%p134) target = $region20
      $region19: #{dice_loss.1} parent=15 // pred_region
        %s137 = sadd.s32 %s16, %s17
        %s138 = smul.u32 2, %s137
        %p139 = scmp.lt.s32.totalorder %s15, 1
        %s140 = scalar_select %p139, %s15, 1
        %p141 = scmp.lt.s32.totalorder %s138, 1
        %s142 = scalar_select %p141, %s138, 1
        %s143 = smul.addr %s140, 2
        %s144 = sadd.s32 %s142, %s143
        %s145 = smul.addr %s144, 4
        %s146 = scalar_lea.vmem %s0, %s145
        %s147 = sadd.s32 %s16, %s17
        %s148 = smul.u32 2, %s147
      $region20: #{dice_loss.1} parent=15 // pred_fallthru
        _
      // Predicated region
      $region21: #{dice_loss.1} parent=15 // pred_check
        %p149 = pneg %p81
      $region22: #{dice_loss.1} parent=15 // pred_check_branch
        %151 = sbr.rel (%p149) target = $region24
      $region23: #{dice_loss.1} parent=15 // pred_region
        %s152 = sadd.s32 %s16, %s17
        %s153 = smul.u32 2, %s152
        %p154 = scmp.lt.s32.totalorder %s15, 1
        %s155 = scalar_select %p154, %s15, 1
        %p156 = scmp.lt.s32.totalorder %s153, 1
        %s157 = scalar_select %p156, %s153, 1
        %s158 = smul.addr %s155, 2
        %s159 = sadd.s32 %s157, %s158
        %s160 = scalar_lea.vmem %s1, %s159
        %s161 = sadd.s32 %s16, %s17
        %s162 = smul.u32 2, %s161
      $region24: #{dice_loss.1} parent=15 // pred_fallthru
        _
    $region16: #{dice_loss.1} parent=5 // pred_fallthru
      _
    %p163 = scmp.le.s32.totalorder 1, %s8
    %p164 = scmp.lt.s32.totalorder %s8, 3
    %p165 = pnand %p163, %p164
    %p166 = pneg %p165
    // Predicated region
    $region25: #{dice_loss.1} parent=5 // pred_check
      _
    $region26: #{dice_loss.1} parent=5 // pred_check_branch
      %168 = sbr.rel (%p165) target = $region28
    $region27: #{dice_loss.1} parent=5 // pred_region
      %s169 = ssub.s32 %s8, 1
      %s170 = sadd.s32 %s19, %s20
      %s171 = smul.u32 2, %s170
      %p172 = scmp.lt.s32.totalorder %s18, 1
      %s173 = scalar_select %p172, %s18, 1
      %p174 = scmp.lt.s32.totalorder %s171, 1
      %s175 = scalar_select %p174, %s171, 1
      %s176 = smul.addr %s173, 2
      %s177 = sadd.s32 %s175, %s176
      %s178 = smul.addr %s177, 4
      %s179 = scalar_lea.vmem %s0, %s178
      %p180 = pneg %p57
      %p181 = pneg %p54
      %s182 = sadd.s32 %s19, %s20
      %s183 = smul.u32 2, %s182
      %p184 = scmp.lt.s32.totalorder %s18, 1
      %s185 = scalar_select %p184, %s18, 1
      %p186 = scmp.lt.s32.totalorder %s183, 1
      %s187 = scalar_select %p186, %s183, 1
      %s188 = smul.addr %s185, 2
      %s189 = sadd.s32 %s187, %s188
      %s190 = scalar_lea.vmem %s1, %s189
      %p191 = pneg %p87
      %p192 = pneg %p84
      %p193 = pneg %p115
      %p194 = pneg %p112
      %p195 = scmp.lt.s32.totalorder %s18, 1
      %s196 = scalar_select %p195, %s18, 1
      %p197 = scmp.lt.s32.totalorder %s19, 0
      %s198 = scalar_select %p197, %s19, 0
      %s199 = sadd.s32 %s198, %s196
      %s200 = smul.addr %s199, 4
      %s201 = scalar_lea.vmem %s2, %s200
      %s202 = sadd.s32 %s19, %s20
      %s203 = smul.u32 2, %s202
      %p204 = scmp.lt.s32.totalorder %s18, 1
      %s205 = scalar_select %p204, %s18, 1
      %p206 = scmp.lt.s32.totalorder %s203, 1
      %s207 = scalar_select %p206, %s203, 1
      %s208 = smul.addr %s205, 2
      %s209 = sadd.s32 %s207, %s208
      %s210 = smul.addr %s209, 4
      %s211 = scalar_lea.vmem %s0, %s210
      %s212 = sadd.s32 %s19, %s20
      %s213 = smul.u32 2, %s212
      %s214 = sadd.s32 %s19, %s20
      %s215 = smul.u32 2, %s214
      %p216 = scmp.lt.s32.totalorder %s18, 1
      %s217 = scalar_select %p216, %s18, 1
      %p218 = scmp.lt.s32.totalorder %s215, 1
      %s219 = scalar_select %p218, %s215, 1
      %s220 = smul.addr %s217, 2
      %s221 = sadd.s32 %s219, %s220
      %s222 = scalar_lea.vmem %s1, %s221
      %s223 = sadd.s32 %s19, %s20
      %s224 = smul.u32 2, %s223
      %p225 = scmp.lt.s32.totalorder %s18, 1
      %s226 = scalar_select %p225, %s18, 1
      %p227 = scmp.lt.s32.totalorder %s19, 0
      %s228 = scalar_select %p227, %s19, 0
      %s229 = sadd.s32 %s228, %s226
      %s230 = smul.addr %s229, 4
      %s231 = scalar_lea.vmem %s2, %s230
      %p232 = scmp.eq.s32.totalorder %s20, 0
      // Predicated region
      $region29: #{dice_loss.1} parent=27 // pred_check
        %p233 = pneg %p232
      $region30: #{dice_loss.1} parent=27 // pred_check_branch
        %235 = sbr.rel (%p233) target = $region32
      $region31: #{dice_loss.1} parent=27 // pred_region
        %236 = vst [vmem:[%s231] sm:$0xf] 0.0
      $region32: #{dice_loss.1} parent=27 // pred_fallthru
        _
      %v237 = vld [vmem:[%s211] sm:$0xff]
      %v238 = vld [vmem:[%s222] sm:$0x3]
      %v239 = vlaneseq
      %v240 = vshrl.u32 %v239, 7
      %v241 = vlaneseq
      %v242 = vshrl.u32 %v241, 7
      %v243 = vsub.s32 0, %v242
      %v244 = vrot.slane %v238, %v243
      %v245 = vlaneseq
      %v246 = vshrl.u32 %v245, 7
      %v247 = vsub.s32 1, %v246
      %v248 = vrot.slane %v238, %v247
      %vm249 = vcmp.eq.s32.totalorder %v244, %v240
      %vm250 = vcmp.eq.s32.totalorder %v248, %v240
      %v251 = vsel %vm249, 1, 0
      %v252 = vsel %vm250, 1, 0
      %v253 = vcvt.s32.f32 %v251
      %v254 = vcvt.s32.f32 %v252
      %v257 = vcombine.low %v253, %v254
      %v259 = vmul.f32 %v237, %v257
      %v261 = vcombine.high %v259, %v259
      %vm263 = vcmask 1043456
      %v264 = vsel %vm263, %v259, 0.0
      %v265 = vsel %vm263, %v261, 0.0
      %v266 = vadd.f32 %v264, %v265
      %267 = vadd.xlane.f32.xlu0 %v266
      %v268 = vpop.xlane.xlu0 %267
      %v269 = vmul.f32 %v237, %v237
      %v271 = vcombine.high %v269, %v269
      %v273 = vsel %vm263, %v269, 0.0
      %v274 = vsel %vm263, %v271, 0.0
      %v275 = vadd.f32 %v273, %v274
      %276 = vadd.xlane.f32.xlu0 %v275
      %v277 = vpop.xlane.xlu0 %276
      %v278 = vsel %vm263, %v253, 0.0
      %v279 = vsel %vm263, %v254, 0.0
      %v280 = vadd.f32 %v278, %v279
      %281 = vadd.xlane.f32.xlu0 %v280
      %v282 = vpop.xlane.xlu0 %281
      %v283 = vlaneseq
      %v284 = vand.u32 %v283, 127
      %vm285 = vcmp.eq.s32.totalorder %v284, 0
      %vm286 = vcmp.eq.s32.totalorder %v284, 1
      %vm287 = vcmp.eq.s32.totalorder %v284, 2
      %v288 = vsel %vm287, %v282, 0.0
      %v289 = vsel %vm286, %v277, %v288
      %v290 = vsel %vm285, %v268, %v289
      %v291 = vld [vmem:[%s231] sm:$0xf]
      %v292 = vadd.f32 %v291, %v290
      %293 = vst [vmem:[%s231] sm:$0xf] %v292
      %p294 = scmp.lt.s32.totalorder %s18, 1
      %s295 = scalar_select %p294, %s18, 1
      %p296 = scmp.lt.s32.totalorder %s19, 0
      %s297 = scalar_select %p296, %s19, 0
      %s298 = sadd.s32 %s297, %s295
      %s299 = smul.addr %s298, 4
      %s300 = scalar_lea.vmem %s2, %s299
      // Predicated region
      $region33: #{dice_loss.1} parent=27 // pred_check
        %p301 = pneg %p112
      $region34: #{dice_loss.1} parent=27 // pred_check_branch
        %303 = sbr.rel (%p301) target = $region36
      $region35: #{dice_loss.1} parent=27 // pred_region
        _
      $region36: #{dice_loss.1} parent=27 // pred_fallthru
        _
    $region28: #{dice_loss.1} parent=5 // pred_fallthru
      _
    %p304 = scmp.le.s32.totalorder 2, %s8
    // Predicated region
    $region37: #{dice_loss.1} parent=5 // pred_check
      %p305 = pneg %p304
    $region38: #{dice_loss.1} parent=5 // pred_check_branch
      %307 = sbr.rel (%p305) target = $region40
    $region39: #{dice_loss.1} parent=5 // pred_region
      %s308 = ssub.s32 %s8, 2
      // Predicated region
      $region41: #{dice_loss.1} parent=39 // pred_check
        %p309 = pneg %p118
      $region42: #{dice_loss.1} parent=39 // pred_check_branch
        %311 = sbr.rel (%p309) target = $region44
      $region43: #{dice_loss.1} parent=39 // pred_region
        %p312 = scmp.lt.s32.totalorder %s21, 1
        %s313 = scalar_select %p312, %s21, 1
        %p314 = scmp.lt.s32.totalorder %s22, 0
        %s315 = scalar_select %p314, %s22, 0
        %s316 = sadd.s32 %s315, %s313
        %s317 = smul.addr %s316, 4
        %s318 = scalar_lea.vmem %s2, %s317
      $region44: #{dice_loss.1} parent=39 // pred_fallthru
        _
    $region40: #{dice_loss.1} parent=5 // pred_fallthru
      _
  $region6: #{dice_loss.1} parent=0 // loop_footer
    %s12 = sadd.s32 1, %s8
  $region7: #{dice_loss.1} parent=0 // loop_footer_branch
    %7 = sbr.rel target = $region3
  $region8: #{dice_loss.1} parent=0 // loop_exit
    _

</llo_original>
